<compile_context>
chip_gen: v7x
topology: tpu7x:2x2x1
jax: 0.10.0
libtpu: 0.0.40
codegen_flags: <defaults>
</compile_context>

<pallas_src>
import functools

import jax
import jax.numpy as jnp
from jax.experimental import pallas as pl
from jax.experimental.pallas import tpu as pltpu

LANE = 128
NUM_CLASSES = 11       # len(target_cols) in the PyTorch module
EXPANSION = 4
STEM = (8, 8, 16)
STEM_STRIDES = (2, 1, 1)
WIDTHS = (8, 16, 16, 16)
DEPTHS = (1, 1, 1, 1)


# ------------------------------ small helpers ------------------------------

def _rup(x, m):
    return (x + m - 1) // m * m


def _pick_tile(n, candidates):
    """Largest candidate dividing n, preferring >=2 blocks (megacore); fallback n."""
    for t in candidates:
        if n % t == 0 and n // t >= 2:
            return t
    for t in candidates:
        if n % t == 0:
            return t
    return n


# ----------------------- fused matmul (+bias, +res, +relu) -----------------

def _mm_kernel(*refs, relu, has_res):
    if has_res:
        a_ref, b_ref, bias_ref, res_ref, o_ref, acc_ref = refs
    else:
        a_ref, b_ref, bias_ref, o_ref, acc_ref = refs
        res_ref = None
    k = pl.program_id(2)

    @pl.when(k == 0)
    def _():
        # bias folded into the accumulator init (saves an epilogue add)
        acc_ref[...] = jnp.broadcast_to(bias_ref[...], acc_ref.shape)

    acc_ref[...] += jnp.dot(a_ref[...], b_ref[...],
                            preferred_element_type=jnp.float32)

    @pl.when(k == pl.num_programs(2) - 1)
    def _():
        r = acc_ref[...]
        if has_res:
            r = r + res_ref[...].astype(jnp.float32)
        if relu:
            r = jnp.maximum(r, 0.0)
        o_ref[...] = r.astype(o_ref.dtype)


def matmul_bias_act(a, b, bias, relu, residual=None, out_dtype=jnp.bfloat16):
    """out = act(a @ b + bias [+ residual]); a:(M,K) bf16, b:(K,N) bf16, bias:(1,N) f32."""
    M, K = a.shape
    K2, Np = b.shape
    assert K == K2 and K % LANE == 0 and Np % LANE == 0

    Mp = _rup(M, 8)
    if Mp != M:                                   # only tiny tensors (FC head) hit this
        a = jnp.pad(a, ((0, Mp - M), (0, 0)))
        if residual is not None:
            residual = jnp.pad(residual, ((0, Mp - M), (0, 0)))

    tm = _pick_tile(Mp, (256, 128, 64, 32, 16, 8))
    tn = _pick_tile(Np, (256, 128))
    tk = K if K <= 2048 else _pick_tile(K, (1024, 512, 256, 128))

    in_specs = [
        pl.BlockSpec((tm, tk), lambda i, j, k: (i, k)),
        pl.BlockSpec((tk, tn), lambda i, j, k: (k, j)),
        pl.BlockSpec((1, tn), lambda i, j, k: (0, j)),
    ]
    inputs = [a, b, bias]
    if residual is not None:
        assert residual.shape == (Mp, Np)
        in_specs.append(pl.BlockSpec((tm, tn), lambda i, j, k: (i, j)))
        inputs.append(residual)

    out = pl.pallas_call(
        functools.partial(_mm_kernel, relu=relu, has_res=residual is not None),
        out_shape=jax.ShapeDtypeStruct((Mp, Np), out_dtype),
        grid_spec=pltpu.PrefetchScalarGridSpec(
            num_scalar_prefetch=0,
            grid=(Mp // tm, Np // tn, K // tk),
            in_specs=in_specs,
            out_specs=pl.BlockSpec((tm, tn), lambda i, j, k: (i, j)),
            scratch_shapes=[pltpu.VMEM((tm, tn), jnp.float32)],
        ),
        compiler_params=pltpu.CompilerParams(
            dimension_semantics=("parallel", "parallel", "arbitrary")),
    )(*inputs)
    if Mp != M:
        out = out[:M]
    return out


# ---------------- implicit-im2col 3x3 stride-1 conv (+BN, +ReLU) -----------

def _conv3x3_s1_kernel(xt_ref, xm_ref, xb_ref, w_ref, b_ref, o_ref, *, hmax, relu):
    h = pl.program_id(1)
    wdim = o_ref.shape[2]
    coutp = o_ref.shape[3]

    def row_contrib(x_ref, kh):
        x = x_ref[0, 0]                                   # (W, Cin_p) bf16
        z = jnp.zeros((1, x.shape[1]), x.dtype)
        x_l = jnp.concatenate([z, x[:-1, :]], axis=0)     # x[w-1] (zero at left border)
        x_r = jnp.concatenate([x[1:, :], z], axis=0)      # x[w+1] (zero at right border)
        return (jnp.dot(x_l, w_ref[kh, 0], preferred_element_type=jnp.float32)
                + jnp.dot(x, w_ref[kh, 1], preferred_element_type=jnp.float32)
                + jnp.dot(x_r, w_ref[kh, 2], preferred_element_type=jnp.float32))

    acc = jnp.broadcast_to(b_ref[...], (wdim, coutp)).astype(jnp.float32)
    acc = acc + row_contrib(xm_ref, 1)
    acc = acc + (h > 0).astype(jnp.float32) * row_contrib(xt_ref, 0)
    acc = acc + (h < hmax - 1).astype(jnp.float32) * row_contrib(xb_ref, 2)
    if relu:
        acc = jnp.maximum(acc, 0.0)
    o_ref[...] = acc.astype(o_ref.dtype).reshape(1, 1, wdim, coutp)


def conv3x3_s1(x, p, relu):
    """3x3 / stride-1 / pad-1 conv with folded BN, no im2col materialization."""
    N, H, W, Cp = x.shape
    w, bias = p["w"], p["b"]                              # (3,3,Cp,Coutp) bf16, (1,Coutp) f32
    assert w.shape[2] == Cp
    coutp = w.shape[3]

    return pl.pallas_call(
        functools.partial(_conv3x3_s1_kernel, hmax=H, relu=relu),
        out_shape=jax.ShapeDtypeStruct((N, H, W, coutp), x.dtype),
        grid_spec=pltpu.PrefetchScalarGridSpec(
            num_scalar_prefetch=0,
            grid=(N, H),
            in_specs=[
                # three row-windows of the same NHWC tensor (clamped at the borders;
                # the out-of-range contributions are masked to zero in-kernel)
                pl.BlockSpec((1, 1, W, Cp), lambda n, h: (n, jnp.maximum(h - 1, 0), 0, 0)),
                pl.BlockSpec((1, 1, W, Cp), lambda n, h: (n, h, 0, 0)),
                pl.BlockSpec((1, 1, W, Cp), lambda n, h: (n, jnp.minimum(h + 1, H - 1), 0, 0)),
                # full weight stays resident in VMEM (constant block index)
                pl.BlockSpec((3, 3, Cp, coutp), lambda n, h: (0, 0, 0, 0)),
                pl.BlockSpec((1, coutp), lambda n, h: (0, 0)),
            ],
            out_specs=pl.BlockSpec((1, 1, W, coutp), lambda n, h: (n, h, 0, 0)),
        ),
        compiler_params=pltpu.CompilerParams(
            dimension_semantics=("parallel", "parallel")),
    )(x, x, x, w, bias)


# --------------------------- gridded pooling reduce ------------------------

def _reduce_kernel(x_ref, o_ref, *, op):
    x = x_ref[...].astype(jnp.float32)
    if op == "max":
        r = jnp.max(x, axis=1)
    else:
        r = jnp.mean(x, axis=1)
    o_ref[...] = r.astype(o_ref.dtype)


def reduce_mid(x, op):
    """x:(M, R, C) -> (M, C) reducing over the middle axis (mean / max), tiled over M."""
    M, R, C = x.shape
    tm = _pick_tile(M, (256, 128, 64, 32, 16, 8))
    return pl.pallas_call(
        functools.partial(_reduce_kernel, op=op),
        out_shape=jax.ShapeDtypeStruct((M, C), x.dtype),
        grid_spec=pltpu.PrefetchScalarGridSpec(
            num_scalar_prefetch=0,
            grid=(M // tm,),
            in_specs=[pl.BlockSpec((tm, R, C), lambda i: (i, 0, 0))],
            out_specs=pl.BlockSpec((tm, C), lambda i: (i, 0)),
        ),
        compiler_params=pltpu.CompilerParams(dimension_semantics=("parallel",)),
    )(x)


# ------------------------------- JAX glue ----------------------------------

def extract_patches(x, k, stride, pad, pad_value=0.0):
    """x: NHWC -> patches (N, Ho, Wo, k*k, C), (kh, kw) major, C minor.  (small cases only)"""
    N, H, W, C = x.shape
    xp = jnp.pad(x, ((0, 0), (pad, pad), (pad, pad), (0, 0)),
                 constant_values=pad_value)
    Ho = (H + 2 * pad - k) // stride + 1
    Wo = (W + 2 * pad - k) // stride + 1
    pats = []
    for i in range(k):
        for j in range(k):
            pats.append(xp[:, i:i + stride * Ho:stride, j:j + stride * Wo:stride, :])
    p = jnp.stack(pats, axis=3)
    return p, Ho, Wo


def conv_bn(x, p, relu, residual_2d=None):
    """Dispatch conv+folded-BN (+ReLU, + optional fused residual for 1x1 convs)."""
    if p["kind"] == "conv3":
        assert residual_2d is None
        return conv3x3_s1(x, p, relu)

    k, stride, pad = p["k"], p["stride"], p["pad"]
    N, H, W, C = x.shape
    if k == 1:
        a = x.reshape(N * H * W, C)
        Ho, Wo = H, W
    else:
        pats, Ho, Wo = extract_patches(x, k, stride, pad)
        a = pats.reshape(N * Ho * Wo, k * k * C)
    Kw = p["w"].shape[0]
    if a.shape[1] != Kw:                       # only the tiny 3-channel stem conv hits this
        a = jnp.pad(a, ((0, 0), (0, Kw - a.shape[1])))
    out = matmul_bias_act(a, p["w"], p["b"], relu=relu, residual=residual_2d)
    return out.reshape(N, Ho, Wo, -1)


def maxpool_3x3_s2(x):
    N, H, W, C = x.shape
    p, Ho, Wo = extract_patches(x, 3, 2, 1, pad_value=-jnp.inf)
    r = reduce_mid(p.reshape(N * Ho * Wo, 9, C), "max")
    return r.reshape(N, Ho, Wo, C)


def avgpool_2x2(x):
    N, H, W, C = x.shape
    p, Ho, Wo = extract_patches(x, 2, 2, 0)
    r = reduce_mid(p.reshape(N * Ho * Wo, 4, C), "mean")
    return r.reshape(N, Ho, Wo, C)


# ------------------------------ parameters ---------------------------------

def _fold_conv_bn(w, gamma, beta, mean, var, eps=1e-5):
    scale = gamma / jnp.sqrt(var + eps)
    w_f = w * scale[:, None, None, None]          # (Cout, Cin, k, k)
    b_f = beta - mean * scale
    return w_f, b_f


def make_conv_params(key, cin, cout, k, stride, raw_input=False):
    """Random conv + BN stats, folded into eval-mode conv, padded + bf16-cast for Pallas."""
    ks = jax.random.split(key, 5)
    w = 0.05 * jax.random.normal(ks[0], (cout, cin, k, k), jnp.float32)
    gamma = jax.random.uniform(ks[1], (cout,), jnp.float32, 0.5, 1.5)
    beta = 0.1 * jax.random.normal(ks[2], (cout,), jnp.float32)
    mean = 0.1 * jax.random.normal(ks[3], (cout,), jnp.float32)
    var = jax.random.uniform(ks[4], (cout,), jnp.float32, 0.5, 1.5)
    w_f, b_f = _fold_conv_bn(w, gamma, beta, mean, var)

    coutp = _rup(cout, LANE)
    bias = jnp.pad(b_f, (0, coutp - cout)).reshape(1, coutp).astype(jnp.float32)
    wt = jnp.transpose(w_f, (2, 3, 1, 0))                 # (k, k, Cin, Cout)

    if k == 3 and stride == 1 and not raw_input:
        cinp = _rup(cin, LANE)
        wt = jnp.pad(wt, ((0, 0), (0, 0), (0, cinp - cin), (0, coutp - cout)))
        return {"kind": "conv3", "w": wt.astype(jnp.bfloat16), "b": bias}

    # matmul / im2col form (1x1 convs, stride-2 3x3 convs, raw-channel stem conv)
    cin_store = cin if raw_input else _rup(cin, LANE)
    wt = jnp.pad(wt, ((0, 0), (0, 0), (0, cin_store - cin), (0, coutp - cout)))
    wm = wt.reshape(k * k * cin_store, coutp)
    kp = _rup(wm.shape[0], LANE)
    wm = jnp.pad(wm, ((0, kp - wm.shape[0]), (0, 0)))
    return {"kind": "mm", "w": wm.astype(jnp.bfloat16), "b": bias,
            "k": k, "stride": stride, "pad": 1 if k == 3 else 0}


def init_params(key):
    keys = iter(jax.random.split(key, 256))
    params = {}

    cin = 3
    stem = []
    for i, (co, s) in enumerate(zip(STEM, STEM_STRIDES)):
        stem.append(make_conv_params(next(keys), cin, co, 3, s, raw_input=(i == 0)))
        cin = co
    params["stem"] = stem

    stages = []
    in_ch = STEM[-1]
    for si, (w, d) in enumerate(zip(WIDTHS, DEPTHS)):
        blocks = []
        for bi in range(d):
            stride = 2 if (si > 0 and bi == 0) else 1
            out_ch = w * EXPANSION
            blk = {
                "stride": stride,
                "conv1": make_conv_params(next(keys), in_ch, w, 1, 1),
                "conv2": make_conv_params(next(keys), w, w, 3, stride),
                "conv3": make_conv_params(next(keys), w, out_ch, 1, 1),
            }
            if stride != 1 or in_ch != out_ch:
                blk["down"] = make_conv_params(next(keys), in_ch, out_ch, 1, 1)
            blocks.append(blk)
            in_ch = out_ch
        stages.append(blocks)
    params["stages"] = stages

    n_features = in_ch
    nfp, ncp = _rup(n_features, LANE), _rup(NUM_CLASSES, LANE)
    kf1, kf2 = jax.random.split(next(keys))
    fc_w = 0.05 * jax.random.normal(kf1, (n_features, NUM_CLASSES), jnp.float32)
    fc_b = 0.01 * jax.random.normal(kf2, (NUM_CLASSES,), jnp.float32)
    params["fc_w"] = jnp.pad(fc_w, ((0, nfp - n_features),
                                    (0, ncp - NUM_CLASSES))).astype(jnp.bfloat16)
    params["fc_b"] = jnp.pad(fc_b, (0, ncp - NUM_CLASSES)).reshape(1, ncp).astype(jnp.float32)
    return params


# -------------------------------- forward ----------------------------------

def bottleneck(x, blk):
    stride = blk["stride"]
    out = conv_bn(x, blk["conv1"], relu=True)
    out = conv_bn(out, blk["conv2"], relu=True)

    identity = x
    if "down" in blk:
        if stride != 1:
            identity = avgpool_2x2(identity)     # resnet-"d" downsample shortcut
        identity = conv_bn(identity, blk["down"], relu=False)

    Ni, Hi, Wi, Ci = identity.shape
    res2d = identity.reshape(Ni * Hi * Wi, Ci)
    # conv3 with residual add + ReLU fused into the matmul epilogue
    return conv_bn(out, blk["conv3"], relu=True, residual_2d=res2d)


def forward(params, x_nchw):
    # NCHW (PyTorch convention) -> NHWC bf16 for the kernels
    x = jnp.transpose(x_nchw, (0, 2, 3, 1)).astype(jnp.bfloat16)

    # deep stem (conv-bn-relu x3) + maxpool
    for p in params["stem"]:
        x = conv_bn(x, p, relu=True)
    x = maxpool_3x3_s2(x)

    # bottleneck stages
    for blocks in params["stages"]:
        for blk in blocks:
            x = bottleneck(x, blk)

    # global average pool + fc head (Linear(n_features, 11))
    N, H, W, C = x.shape
    pooled = reduce_mid(x.reshape(N, H * W, C), "mean")          # (N, n_features_padded)
    logits = matmul_bias_act(pooled, params["fc_w"], params["fc_b"],
                             relu=False, out_dtype=jnp.float32)
    return logits[:, :NUM_CLASSES]                               # (N, 11)


if __name__ == "__main__":
    key = jax.random.PRNGKey(0)
    kp, kx = jax.random.split(key)
    params = init_params(kp)

    # NCHW input, like the PyTorch module
    x = jax.random.normal(kx, (2, 3, 64, 64), jnp.float32)

    out = forward(params, x)
    jax.block_until_ready(out)
    assert out.shape == (2, NUM_CLASSES) and out.dtype == jnp.float32
    print("KERNEL_OK")
</pallas_src>

<mosaic_0001>
module attributes {stable_mosaic.version = 11 : i64} {
  func.func @_mm_kernel(%arg0: i32, %arg1: i32, %arg2: i32, %arg3: memref<256x128xbf16, #tpu.memory_space<vmem>>, %arg4: memref<128x128xbf16, #tpu.memory_space<vmem>>, %arg5: memref<1x128xf32, #tpu.memory_space<vmem>>, %arg6: memref<256x128xbf16, #tpu.memory_space<vmem>>, %arg7: memref<256x128xf32, #tpu.memory_space<vmem>>) attributes {dimension_semantics = [#tpu.dimension_semantics<parallel>, #tpu.dimension_semantics<parallel>, #tpu.dimension_semantics<arbitrary>], iteration_bounds = array<i64: 8, 1, 1>, scalar_prefetch = 0 : i64, scratch_operands = 1 : i64, tpu.core_type = #tpu.core_type<tc>, window_params = [{transform_indices = @transform_0, window_bounds = array<i64: 256, 128>}, {transform_indices = @transform_1, window_bounds = array<i64: 128, 128>}, {transform_indices = @transform_2, window_bounds = array<i64: 1, 128>}, {transform_indices = @transform_3, window_bounds = array<i64: 256, 128>}]} {
    %c0_i32 = arith.constant 0 : i32
    %0 = arith.cmpi eq, %arg2, %c0_i32 : i32
    %1 = arith.extui %0 : i1 to i32
    %c0_i32_0 = arith.constant 0 : i32
    %2 = arith.cmpi ne, %1, %c0_i32_0 : i32
    scf.if %2 {
      %c0_10 = arith.constant 0 : index
      %c0_11 = arith.constant 0 : index
      %12 = vector.load %arg5[%c0_10, %c0_11] : memref<1x128xf32, #tpu.memory_space<vmem>>, vector<1x128xf32>
      %13 = vector.shape_cast %12 : vector<1x128xf32> to vector<1x128xf32>
      %14 = vector.broadcast %13 : vector<1x128xf32> to vector<256x128xf32>
      %c0_12 = arith.constant 0 : index
      %c0_13 = arith.constant 0 : index
      %15 = vector.load %arg7[%c0_12, %c0_13] : memref<256x128xf32, #tpu.memory_space<vmem>>, vector<256x128xf32>
      tpu.vector_store %arg7[%c0_12, %c0_13], %14 {strides = array<i32>} : memref<256x128xf32, #tpu.memory_space<vmem>>, vector<256x128xf32>,
    } else {
    }
    %c0 = arith.constant 0 : index
    %c0_1 = arith.constant 0 : index
    %3 = vector.load %arg7[%c0, %c0_1] : memref<256x128xf32, #tpu.memory_space<vmem>>, vector<256x128xf32>
    %c0_2 = arith.constant 0 : index
    %c0_3 = arith.constant 0 : index
    %4 = vector.load %arg3[%c0_2, %c0_3] : memref<256x128xbf16, #tpu.memory_space<vmem>>, vector<256x128xbf16>
    %c0_4 = arith.constant 0 : index
    %c0_5 = arith.constant 0 : index
    %5 = vector.load %arg4[%c0_4, %c0_5] : memref<128x128xbf16, #tpu.memory_space<vmem>>, vector<128x128xbf16>
    %cst = arith.constant dense<0.000000e+00> : vector<256x128xf32>
    %6 = tpu.matmul %4, %5, %cst {dimension_numbers = #tpu.dot_dimension_numbers<[1], [0], [0], [1], [0, 0, 1, 1], [], []>} : vector<256x128xbf16>, vector<128x128xbf16>, vector<256x128xf32> -> vector<256x128xf32>
    %7 = arith.addf %3, %6 : vector<256x128xf32>
    %c0_6 = arith.constant 0 : index
    %c0_7 = arith.constant 0 : index
    %8 = vector.load %arg7[%c0_6, %c0_7] : memref<256x128xf32, #tpu.memory_space<vmem>>, vector<256x128xf32>
    tpu.vector_store %arg7[%c0_6, %c0_7], %7 {strides = array<i32>} : memref<256x128xf32, #tpu.memory_space<vmem>>, vector<256x128xf32>,
    %c0_i32_8 = arith.constant 0 : i32
    %9 = arith.cmpi eq, %arg2, %c0_i32_8 : i32
    %10 = arith.extui %9 : i1 to i32
    %c0_i32_9 = arith.constant 0 : i32
    %11 = arith.cmpi ne, %10, %c0_i32_9 : i32
    scf.if %11 {
      %c0_10 = arith.constant 0 : index
      %c0_11 = arith.constant 0 : index
      %12 = vector.load %arg7[%c0_10, %c0_11] : memref<256x128xf32, #tpu.memory_space<vmem>>, vector<256x128xf32>
      %cst_12 = arith.constant 0.000000e+00 : f32
      %13 = vector.broadcast %cst_12 : f32 to vector<256x128xf32>
      %14 = arith.maximumf %12, %13 : vector<256x128xf32>
      %15 = arith.truncf %14 : vector<256x128xf32> to vector<256x128xbf16>
      %c0_13 = arith.constant 0 : index
      %c0_14 = arith.constant 0 : index
      %16 = vector.load %arg6[%c0_13, %c0_14] : memref<256x128xbf16, #tpu.memory_space<vmem>>, vector<256x128xbf16>
      tpu.vector_store %arg6[%c0_13, %c0_14], %15 {strides = array<i32>} : memref<256x128xbf16, #tpu.memory_space<vmem>>, vector<256x128xbf16>,
    } else {
    }
    return
  }
  func.func @transform_0(%arg0: i32, %arg1: i32, %arg2: i32) -> (i32, i32) {
    %c0_i32 = arith.constant 0 : i32
    return %arg0, %arg2 : i32, i32
  }
  func.func @transform_1(%arg0: i32, %arg1: i32, %arg2: i32) -> (i32, i32) {
    %c0_i32 = arith.constant 0 : i32
    return %arg2, %arg1 : i32, i32
  }
  func.func @transform_2(%arg0: i32, %arg1: i32, %arg2: i32) -> (i32, i32) {
    %c0_i32 = arith.constant 0 : i32
    %c0_i32_0 = arith.constant 0 : i32
    return %c0_i32, %arg1 : i32, i32
  }
  func.func @transform_3(%arg0: i32, %arg1: i32, %arg2: i32) -> (i32, i32) {
    %c0_i32 = arith.constant 0 : i32
    return %arg0, %arg1 : i32, i32
  }
}

</mosaic_0001>

<llo_original>
// kernel: tpu_custom_call.1
$region0: #{tpu_custom_call.1}
  #allocation0 [shape = 'u32[]', space=smem, size = 0x4, offset = 0x4, fixed_abs, tag = 'smem constant byte address 0x4 - core index']
  #allocation1 [shape = 'u32[144,128]{1,0:T(1,128)}', space=vmem, size = 0x12000, scoped, tag = 'internal scratch']
  #allocation2 [shape = 'f32[256,128]{1,0:T(8,128)}', space=vmem, size = 0x20000, scoped, tag = 'scratch operand']
  %s0 = inlined_call_operand.hbm [shape: bf16[2048,128], index: 0, kind: input, shape index: {}]
  %s1 = inlined_call_operand.hbm [shape: bf16[128,128], index: 1, kind: input, shape index: {}]
  %s2 = inlined_call_operand.vmem [shape: f32[1,128], index: 2, kind: input, shape index: {}]
  %s3 = inlined_call_operand.hbm [shape: bf16[2048,128], index: 3, kind: output, shape index: {}]
  %s4 = sld [smem:[#allocation0]]
  $region61: #{tpu_custom_call.1} parent=0
    _
  %s6 = ssub.s32 1, %s4
  %s7 = scalar_select 0, %s6, %s4
  $region1: #{tpu_custom_call.1} parent=0
    #allocation3 [shape = 'u8[131072]{0}', space=vmem, size = 0x20000, scoped, tag = 'input window, operand 0']
    #allocation4 [shape = 's32[2]{0}', space=sflag, size = 0x8, scoped, tag = 'scoped memory for tpu_custom_call.1']
    #allocation5 [shape = 's32[2]{0}', space=sflag, size = 0x8, scoped, tag = 'scoped memory for tpu_custom_call.1']
    #allocation6 [shape = 'u8[32768]{0}', space=vmem, size = 0x8000, scoped, tag = 'input window, operand 1, single buffered']
    #allocation7 [shape = 's32[1]{0}', space=sflag, size = 0x4, scoped, tag = 'scoped memory for tpu_custom_call.1']
    #allocation8 [shape = 'u8[131072]{0}', space=vmem, size = 0x20000, scoped, tag = 'output window, operand 0']
    %8 = vsyncpa [#allocation4], 0
    %s9 = scalar_lea.sflag [#allocation4], 1
    %10 = vsyncpa %s9, 0
    %11 = vsyncpa [#allocation7], 0
    %12 = vsyncpa [#allocation5], 0
    %s13 = scalar_lea.sflag [#allocation5], 1
    %14 = vsyncpa %s13, 0
    loop: start=0, step=1, limit=10
    $region2: #{tpu_custom_call.1} parent=1 // loop_pre_header
      _
    $region3: #{tpu_custom_call.1} parent=1 // loop_header
      %s16 = sphi 0, %s20
      %p17 = scmp.ge.s32.totalorder %s16, 10
      %s23 = sphi 0, %s42
      %s24 = sphi 0, %s38
      %s25 = sphi 0, %s34
      %s26 = sphi 0, %s23
      %s27 = sphi 0, %s24
      %s28 = sphi 0, %s25
      %s29 = sphi 0, %s26
      %s30 = sphi 0, %s27
      %s31 = sphi 0, %s28
      %s47 = sphi 0, %s49
      %s50 = sphi 0, %s47
      %s51 = sphi 0, %s50
      %s67 = sphi 0, %s51
      %s75 = sphi 0, %s77
      %s78 = sphi 0, %s75
      %s79 = sphi 0, %s78
      %s95 = sphi 0, %s79
      %s101 = sphi 0, %s103
      %s104 = sphi 0, %s101
      %s105 = sphi 0, %s104
      %s121 = sphi 0, %s105
      %s129 = sphi 0, %s131
      %s132 = sphi 0, %s129
      %s133 = sphi 0, %s132
      %s149 = sphi 0, %s133
    $region4: #{tpu_custom_call.1} parent=1 // loop_header_branch
      %19 = sbr.rel (%p17) target = $region8
    $region5: #{tpu_custom_call.1} parent=1 // loop_body
      %s21 = ssub.s32 %s16, 1
      %s22 = ssub.s32 %s16, 2
      %s32 = sadd.s32 1, %s25
      %p33 = scmp.ge.s32.totalorder %s32, 1
      %s34 = scalar_select %p33, 0, %s32
      %s35 = sadd.s32 1, %s24
      %s36 = scalar_select %p33, %s35, %s24
      %p37 = scmp.ge.s32.totalorder %s36, 1
      %s38 = scalar_select %p37, 0, %s36
      %s39 = sadd.s32 1, %s23
      %s40 = scalar_select %p37, %s39, %s23
      %p41 = scmp.ge.s32.totalorder %s40, 8
      %s42 = scalar_select %p41, 0, %s40
      %s43 = ssub.s32 %s23, %s42
      %s44 = ssub.s32 %s25, %s34
      %s45 = sor.u32 %s43, %s44
      %p46 = scmp.eq.s32.totalorder %s45, 0
      %s48 = sadd.s32 %s47, 1
      %s49 = scalar_select %p46, %s47, %s48
      %p52 = pneg %p46
      %p53 = scmp.eq.s32.totalorder %s16, 7
      %p54 = por %p52, %p53
      %p55 = scmp.ne.s32.totalorder %s47, %s50
      %p56 = scmp.eq.s32.totalorder %s16, 0
      %p57 = por %p55, %p56
      %p58 = scmp.ne.s32.totalorder %s47, %s50
      %p59 = scmp.eq.s32.totalorder %s21, 7
      %p60 = por %p58, %p59
      %p61 = scmp.ne.s32.totalorder %s50, %s51
      %p62 = scmp.eq.s32.totalorder %s21, 0
      %p63 = por %p61, %p62
      %p64 = scmp.ne.s32.totalorder %s50, %s51
      %p65 = scmp.eq.s32.totalorder %s22, 7
      %p66 = por %p64, %p65
      %p68 = scmp.ne.s32.totalorder %s51, %s67
      %p69 = scmp.eq.s32.totalorder %s22, 0
      %p70 = por %p68, %p69
      %s71 = ssub.s32 %s25, %s34
      %s72 = ssub.s32 %s24, %s38
      %s73 = sor.u32 %s71, %s72
      %p74 = scmp.eq.s32.totalorder %s73, 0
      %s76 = sadd.s32 %s75, 1
      %s77 = scalar_select %p74, %s75, %s76
      %p80 = pneg %p74
      %p81 = scmp.eq.s32.totalorder %s16, 7
      %p82 = por %p80, %p81
      %p83 = scmp.ne.s32.totalorder %s75, %s78
      %p84 = scmp.eq.s32.totalorder %s16, 0
      %p85 = por %p83, %p84
      %p86 = scmp.ne.s32.totalorder %s75, %s78
      %p87 = scmp.eq.s32.totalorder %s21, 7
      %p88 = por %p86, %p87
      %p89 = scmp.ne.s32.totalorder %s78, %s79
      %p90 = scmp.eq.s32.totalorder %s21, 0
      %p91 = por %p89, %p90
      %p92 = scmp.ne.s32.totalorder %s78, %s79
      %p93 = scmp.eq.s32.totalorder %s22, 7
      %p94 = por %p92, %p93
      %p96 = scmp.ne.s32.totalorder %s79, %s95
      %p97 = scmp.eq.s32.totalorder %s22, 0
      %p98 = por %p96, %p97
      %s99 = ssub.s32 %s24, %s38
      %p100 = scmp.eq.s32.totalorder %s99, 0
      %s102 = sadd.s32 %s101, 1
      %s103 = scalar_select %p100, %s101, %s102
      %p106 = pneg %p100
      %p107 = scmp.eq.s32.totalorder %s16, 7
      %p108 = por %p106, %p107
      %p109 = scmp.ne.s32.totalorder %s101, %s104
      %p110 = scmp.eq.s32.totalorder %s16, 0
      %p111 = por %p109, %p110
      %p112 = scmp.ne.s32.totalorder %s101, %s104
      %p113 = scmp.eq.s32.totalorder %s21, 7
      %p114 = por %p112, %p113
      %p115 = scmp.ne.s32.totalorder %s104, %s105
      %p116 = scmp.eq.s32.totalorder %s21, 0
      %p117 = por %p115, %p116
      %p118 = scmp.ne.s32.totalorder %s104, %s105
      %p119 = scmp.eq.s32.totalorder %s22, 7
      %p120 = por %p118, %p119
      %p122 = scmp.ne.s32.totalorder %s105, %s121
      %p123 = scmp.eq.s32.totalorder %s22, 0
      %p124 = por %p122, %p123
      %s125 = ssub.s32 %s23, %s42
      %s126 = ssub.s32 %s24, %s38
      %s127 = sor.u32 %s125, %s126
      %p128 = scmp.eq.s32.totalorder %s127, 0
      %s130 = sadd.s32 %s129, 1
      %s131 = scalar_select %p128, %s129, %s130
      %p134 = pneg %p128
      %p135 = scmp.eq.s32.totalorder %s16, 7
      %p136 = por %p134, %p135
      %p137 = scmp.ne.s32.totalorder %s129, %s132
      %p138 = scmp.eq.s32.totalorder %s16, 0
      %p139 = por %p137, %p138
      %p140 = scmp.ne.s32.totalorder %s129, %s132
      %p141 = scmp.eq.s32.totalorder %s21, 7
      %p142 = por %p140, %p141
      %p143 = scmp.ne.s32.totalorder %s132, %s133
      %p144 = scmp.eq.s32.totalorder %s21, 0
      %p145 = por %p143, %p144
      %p146 = scmp.ne.s32.totalorder %s132, %s133
      %p147 = scmp.eq.s32.totalorder %s22, 7
      %p148 = por %p146, %p147
      %p150 = scmp.ne.s32.totalorder %s133, %s149
      %p151 = scmp.eq.s32.totalorder %s22, 0
      %p152 = por %p150, %p151
      %p153 = scmp.le.s32.totalorder 1, %s16
      %p154 = scmp.lt.s32.totalorder %s16, 9
      %p155 = pnand %p153, %p154
      %p156 = pneg %p155
      // Predicated region
      $region9: #{tpu_custom_call.1} parent=5 // pred_check
        _
      $region10: #{tpu_custom_call.1} parent=5 // pred_check_branch
        %158 = sbr.rel (%p155) target = $region12
      $region11: #{tpu_custom_call.1} parent=5 // pred_region
        %s159 = ssub.s32 %s16, 1
        // Predicated region
        $region13: #{tpu_custom_call.1} parent=11 // pred_check
          %p160 = pneg %p91
        $region14: #{tpu_custom_call.1} parent=11 // pred_check_branch
          %162 = sbr.rel (%p160) target = $region16
        $region15: #{tpu_custom_call.1} parent=11 // pred_region
          %s163 = smul.u32 16, %s28
          %s165 = ssub.s32 1024, 1024
          %166 = vsyncadd [#allocation7], %s165
          %s167 = sadd.s32 %s27, %s163
          %s168 = smul.addr %s167, 64
          %s169 = scalar_lea.hbm %s1, %s168
          %s170 = sshll.u32 [#allocation6], 4
          %s171 = int_to_ptr.vmem [resolvable:$true] %s170
          %176 = dma.hbm_to_vmem [thread:$0]  %s169, 1024, %s171, [#allocation7], 64, 64, 4
        $region16: #{tpu_custom_call.1} parent=11 // pred_fallthru
          _
        // Predicated region
        $region17: #{tpu_custom_call.1} parent=11 // pred_check
          %p177 = pneg %p117
        $region18: #{tpu_custom_call.1} parent=11 // pred_check_branch
          %179 = sbr.rel (%p177) target = $region20
        $region19: #{tpu_custom_call.1} parent=11 // pred_region
          %p180 = scmp.lt.s32.totalorder %s27, 0
          %s181 = scalar_select %p180, %s27, 0
          %s182 = scalar_lea.vmem %s2, %s181
        $region20: #{tpu_custom_call.1} parent=11 // pred_fallthru
          _
      $region12: #{tpu_custom_call.1} parent=5 // pred_fallthru
        _
      %p183 = scmp.lt.s32.totalorder %s16, 8
      // Predicated region
      $region21: #{tpu_custom_call.1} parent=5 // pred_check
        %p184 = pneg %p183
      $region22: #{tpu_custom_call.1} parent=5 // pred_check_branch
        %186 = sbr.rel (%p184) target = $region24
      $region23: #{tpu_custom_call.1} parent=5 // pred_region
        // Predicated region
        $region25: #{tpu_custom_call.1} parent=23 // pred_check
          %p187 = pneg %p57
        $region26: #{tpu_custom_call.1} parent=23 // pred_check_branch
          %189 = sbr.rel (%p187) target = $region28
        $region27: #{tpu_custom_call.1} parent=23 // pred_region
          %s190 = sand.u32 %s47, 1
          %s191 = scalar_lea.sflag [#allocation4], %s190
          %s192 = sand.u32 %s47, 1
          %s193 = smul.addr %s192, 128
          %s194 = scalar_lea.vmem [#allocation3], %s193
          %s195 = smul.u32 32, %s23
          %s197 = ssub.s32 2048, 2048
          %198 = vsyncadd %s191, %s197
          %s199 = sadd.s32 %s25, %s195
          %s200 = smul.addr %s199, 64
          %s201 = scalar_lea.hbm %s0, %s200
          %s202 = sshll.u32 %s194, 4
          %s203 = int_to_ptr.vmem [resolvable:$true] %s202
          %208 = dma.hbm_to_vmem [thread:$0]  %s201, 2048, %s203, %s191, 64, 64, 4
        $region28: #{tpu_custom_call.1} parent=23 // pred_fallthru
          _
      $region24: #{tpu_custom_call.1} parent=5 // pred_fallthru
        _
      %p209 = scmp.le.s32.totalorder 1, %s16
      %p210 = scmp.lt.s32.totalorder %s16, 9
      %p211 = pnand %p209, %p210
      %p212 = pneg %p211
      // Predicated region
      $region29: #{tpu_custom_call.1} parent=5 // pred_check
        _
      $region30: #{tpu_custom_call.1} parent=5 // pred_check_branch
        %214 = sbr.rel (%p211) target = $region32
      $region31: #{tpu_custom_call.1} parent=5 // pred_region
        %s215 = ssub.s32 %s16, 1
        %s216 = sand.u32 %s50, 1
        %s217 = scalar_lea.sflag [#allocation4], %s216
        %s218 = sand.u32 %s50, 1
        %s219 = smul.addr %s218, 128
        %s220 = scalar_lea.vmem [#allocation3], %s219
        // Predicated region
        $region33: #{tpu_custom_call.1} parent=31 // pred_check
          %p221 = pneg %p63
        $region34: #{tpu_custom_call.1} parent=31 // pred_check_branch
          %223 = sbr.rel (%p221) target = $region36
        $region35: #{tpu_custom_call.1} parent=31 // pred_region
          %224 = dma.done %s217, 2048
        $region36: #{tpu_custom_call.1} parent=31 // pred_fallthru
          _
        // Predicated region
        $region37: #{tpu_custom_call.1} parent=31 // pred_check
          %p225 = pneg %p91
        $region38: #{tpu_custom_call.1} parent=31 // pred_check_branch
          %227 = sbr.rel (%p225) target = $region40
        $region39: #{tpu_custom_call.1} parent=31 // pred_region
          %228 = dma.done [#allocation7], 1024
        $region40: #{tpu_custom_call.1} parent=31 // pred_fallthru
          _
        %s229 = sand.u32 %s50, 1
        %s230 = scalar_lea.sflag [#allocation4], %s229
        %s231 = sand.u32 %s50, 1
        %s232 = smul.addr %s231, 128
        %s233 = scalar_lea.vmem [#allocation3], %s232
        %p234 = pneg %p63
        %p235 = pneg %p60
        %p236 = pneg %p91
        %p237 = pneg %p88
        %p238 = scmp.lt.s32.totalorder %s27, 0
        %s239 = scalar_select %p238, %s27, 0
        %s240 = scalar_lea.vmem %s2, %s239
        %p241 = pneg %p117
        %p242 = pneg %p114
        %p243 = pneg %p145
        %p244 = pneg %p142
        %s245 = sand.u32 %s132, 1
        %s246 = scalar_lea.sflag [#allocation5], %s245
        %s247 = sand.u32 %s132, 1
        %s248 = smul.addr %s247, 128
        %s249 = scalar_lea.vmem [#allocation8], %s248
        %s250 = smul.u32 32, %s26
        %s251 = smul.u32 16, %s28
        %p252 = scmp.lt.s32.totalorder %s27, 0
        %s253 = scalar_select %p252, %s27, 0
        %s254 = scalar_lea.vmem %s2, %s253
        %s255 = smul.u32 32, %s26
        %p257 = scmp.eq.s32.totalorder %s28, 0
        // Predicated region
        $region41: #{tpu_custom_call.1} parent=31 // pred_check
          %p258 = pneg %p257
        $region42: #{tpu_custom_call.1} parent=31 // pred_check_branch
          %260 = sbr.rel (%p258) target = $region44
        $region43: #{tpu_custom_call.1} parent=31 // pred_region
          %v261 = vld [vmem:[%s254] sm:$0x1]
          %v263 = vlaneseq
          %v264 = vshrl.u32 %v263, 7
          %v265 = vsub.s32 0, %v264
          %v266 = vrot.slane %v261, %v265
          %268 = vst [vmem:[#allocation2] sm:$0xff] %v266
          %269 = vst [vmem:[#allocation2 + $0x8] sm:$0xff] %v266
          %270 = vst [vmem:[#allocation2 + $0x10] sm:$0xff] %v266
          %271 = vst [vmem:[#allocation2 + $0x18] sm:$0xff] %v266
          %272 = vst [vmem:[#allocation2 + $0x20] sm:$0xff] %v266
          %273 = vst [vmem:[#allocation2 + $0x28] sm:$0xff] %v266
          %274 = vst [vmem:[#allocation2 + $0x30] sm:$0xff] %v266
          %275 = vst [vmem:[#allocation2 + $0x38] sm:$0xff] %v266
          %276 = vst [vmem:[#allocation2 + $0x40] sm:$0xff] %v266
          %277 = vst [vmem:[#allocation2 + $0x48] sm:$0xff] %v266
          %278 = vst [vmem:[#allocation2 + $0x50] sm:$0xff] %v266
          %279 = vst [vmem:[#allocation2 + $0x58] sm:$0xff] %v266
          %280 = vst [vmem:[#allocation2 + $0x60] sm:$0xff] %v266
          %281 = vst [vmem:[#allocation2 + $0x68] sm:$0xff] %v266
          %282 = vst [vmem:[#allocation2 + $0x70] sm:$0xff] %v266
          %283 = vst [vmem:[#allocation2 + $0x78] sm:$0xff] %v266
          %284 = vst [vmem:[#allocation2 + $0x80] sm:$0xff] %v266
          %285 = vst [vmem:[#allocation2 + $0x88] sm:$0xff] %v266
          %286 = vst [vmem:[#allocation2 + $0x90] sm:$0xff] %v266
          %287 = vst [vmem:[#allocation2 + $0x98] sm:$0xff] %v266
          %288 = vst [vmem:[#allocation2 + $0xa0] sm:$0xff] %v266
          %289 = vst [vmem:[#allocation2 + $0xa8] sm:$0xff] %v266
          %290 = vst [vmem:[#allocation2 + $0xb0] sm:$0xff] %v266
          %291 = vst [vmem:[#allocation2 + $0xb8] sm:$0xff] %v266
          %292 = vst [vmem:[#allocation2 + $0xc0] sm:$0xff] %v266
          %293 = vst [vmem:[#allocation2 + $0xc8] sm:$0xff] %v266
          %294 = vst [vmem:[#allocation2 + $0xd0] sm:$0xff] %v266
          %295 = vst [vmem:[#allocation2 + $0xd8] sm:$0xff] %v266
          %296 = vst [vmem:[#allocation2 + $0xe0] sm:$0xff] %v266
          %297 = vst [vmem:[#allocation2 + $0xe8] sm:$0xff] %v266
          %298 = vst [vmem:[#allocation2 + $0xf0] sm:$0xff] %v266
          %299 = vst [vmem:[#allocation2 + $0xf8] sm:$0xff] %v266
        $region44: #{tpu_custom_call.1} parent=31 // pred_fallthru
          _
        %v300 = vld [vmem:[#allocation2] sm:$0xff]
        %v301 = vld [vmem:[#allocation2 + $0x8] sm:$0xff]
        %v302 = vld [vmem:[#allocation2 + $0x10] sm:$0xff]
        %v303 = vld [vmem:[#allocation2 + $0x18] sm:$0xff]
        %v304 = vld [vmem:[#allocation2 + $0x20] sm:$0xff]
        %v305 = vld [vmem:[#allocation2 + $0x28] sm:$0xff]
        %v306 = vld [vmem:[#allocation2 + $0x30] sm:$0xff]
        %v307 = vld [vmem:[#allocation2 + $0x38] sm:$0xff]
        %v308 = vld [vmem:[#allocation2 + $0x40] sm:$0xff]
        %v309 = vld [vmem:[#allocation2 + $0x48] sm:$0xff]
        %v310 = vld [vmem:[#allocation2 + $0x50] sm:$0xff]
        %v311 = vld [vmem:[#allocation2 + $0x58] sm:$0xff]
        %v312 = vld [vmem:[#allocation2 + $0x60] sm:$0xff]
        %v313 = vld [vmem:[#allocation2 + $0x68] sm:$0xff]
        %v314 = vld [vmem:[#allocation2 + $0x70] sm:$0xff]
        %v315 = vld [vmem:[#allocation2 + $0x78] sm:$0xff]
        %v316 = vld [vmem:[#allocation2 + $0x80] sm:$0xff]
        %v317 = vld [vmem:[#allocation2 + $0x88] sm:$0xff]
        %v318 = vld [vmem:[#allocation2 + $0x90] sm:$0xff]
        %v319 = vld [vmem:[#allocation2 + $0x98] sm:$0xff]
        %v320 = vld [vmem:[#allocation2 + $0xa0] sm:$0xff]
        %v321 = vld [vmem:[#allocation2 + $0xa8] sm:$0xff]
        %v322 = vld [vmem:[#allocation2 + $0xb0] sm:$0xff]
        %v323 = vld [vmem:[#allocation2 + $0xb8] sm:$0xff]
        %v324 = vld [vmem:[#allocation2 + $0xc0] sm:$0xff]
        %v325 = vld [vmem:[#allocation2 + $0xc8] sm:$0xff]
        %v326 = vld [vmem:[#allocation2 + $0xd0] sm:$0xff]
        %v327 = vld [vmem:[#allocation2 + $0xd8] sm:$0xff]
        %v328 = vld [vmem:[#allocation2 + $0xe0] sm:$0xff]
        %v329 = vld [vmem:[#allocation2 + $0xe8] sm:$0xff]
        %v330 = vld [vmem:[#allocation2 + $0xf0] sm:$0xff]
        %v331 = vld [vmem:[#allocation2 + $0xf8] sm:$0xff]
        %v332 = vld [vmem:[%s220] sm:$0xf]
        %v333 = vld [vmem:[%s220 + $0x4] sm:$0xf]
        %v334 = vld [vmem:[%s220 + $0x8] sm:$0xf]
        %v335 = vld [vmem:[%s220 + $0xc] sm:$0xf]
        %v336 = vld [vmem:[%s220 + $0x10] sm:$0xf]
        %v337 = vld [vmem:[%s220 + $0x14] sm:$0xf]
        %v338 = vld [vmem:[%s220 + $0x18] sm:$0xf]
        %v339 = vld [vmem:[%s220 + $0x1c] sm:$0xf]
        %v340 = vld [vmem:[%s220 + $0x20] sm:$0xf]
        %v341 = vld [vmem:[%s220 + $0x24] sm:$0xf]
        %v342 = vld [vmem:[%s220 + $0x28] sm:$0xf]
        %v343 = vld [vmem:[%s220 + $0x2c] sm:$0xf]
        %v344 = vld [vmem:[%s220 + $0x30] sm:$0xf]
        %v345 = vld [vmem:[%s220 + $0x34] sm:$0xf]
        %v346 = vld [vmem:[%s220 + $0x38] sm:$0xf]
        %v347 = vld [vmem:[%s220 + $0x3c] sm:$0xf]
        %v348 = vld [vmem:[%s220 + $0x40] sm:$0xf]
        %v349 = vld [vmem:[%s220 + $0x44] sm:$0xf]
        %v350 = vld [vmem:[%s220 + $0x48] sm:$0xf]
        %v351 = vld [vmem:[%s220 + $0x4c] sm:$0xf]
        %v352 = vld [vmem:[%s220 + $0x50] sm:$0xf]
        %v353 = vld [vmem:[%s220 + $0x54] sm:$0xf]
        %v354 = vld [vmem:[%s220 + $0x58] sm:$0xf]
        %v355 = vld [vmem:[%s220 + $0x5c] sm:$0xf]
        %v356 = vld [vmem:[%s220 + $0x60] sm:$0xf]
        %v357 = vld [vmem:[%s220 + $0x64] sm:$0xf]
        %v358 = vld [vmem:[%s220 + $0x68] sm:$0xf]
        %v359 = vld [vmem:[%s220 + $0x6c] sm:$0xf]
        %v360 = vld [vmem:[%s220 + $0x70] sm:$0xf]
        %v361 = vld [vmem:[%s220 + $0x74] sm:$0xf]
        %v362 = vld [vmem:[%s220 + $0x78] sm:$0xf]
        %v363 = vld [vmem:[%s220 + $0x7c] sm:$0xf]
        %v364 = vld [vmem:[#allocation6] sm:$0xf]
        %v365 = vld [vmem:[#allocation6 + $0x4] sm:$0xf]
        %v366 = vld [vmem:[#allocation6 + $0x8] sm:$0xf]
        %v367 = vld [vmem:[#allocation6 + $0xc] sm:$0xf]
        %v368 = vld [vmem:[#allocation6 + $0x10] sm:$0xf]
        %v369 = vld [vmem:[#allocation6 + $0x14] sm:$0xf]
        %v370 = vld [vmem:[#allocation6 + $0x18] sm:$0xf]
        %v371 = vld [vmem:[#allocation6 + $0x1c] sm:$0xf]
        %v372 = vld [vmem:[#allocation6 + $0x20] sm:$0xf]
        %v373 = vld [vmem:[#allocation6 + $0x24] sm:$0xf]
        %v374 = vld [vmem:[#allocation6 + $0x28] sm:$0xf]
        %v375 = vld [vmem:[#allocation6 + $0x2c] sm:$0xf]
        %v376 = vld [vmem:[#allocation6 + $0x30] sm:$0xf]
        %v377 = vld [vmem:[#allocation6 + $0x34] sm:$0xf]
        %v378 = vld [vmem:[#allocation6 + $0x38] sm:$0xf]
        %v379 = vld [vmem:[#allocation6 + $0x3c] sm:$0xf]
        %v412 = vunpack.c.l.b16 %v332
        %v413 = vunpack.c.l.b16 %v333
        %v414 = vunpack.c.l.b16 %v334
        %v415 = vunpack.c.l.b16 %v335
        %v416 = vunpack.c.l.b16 %v336
        %v417 = vunpack.c.l.b16 %v337
        %v418 = vunpack.c.l.b16 %v338
        %v419 = vunpack.c.l.b16 %v339
        %v420 = vunpack.c.l.b16 %v340
        %v421 = vunpack.c.l.b16 %v341
        %v422 = vunpack.c.l.b16 %v342
        %v423 = vunpack.c.l.b16 %v343
        %v424 = vunpack.c.l.b16 %v344
        %v425 = vunpack.c.l.b16 %v345
        %v426 = vunpack.c.l.b16 %v346
        %v427 = vunpack.c.l.b16 %v347
        %v428 = vunpack.c.l.b16 %v348
        %v429 = vunpack.c.l.b16 %v349
        %v430 = vunpack.c.l.b16 %v350
        %v431 = vunpack.c.l.b16 %v351
        %v432 = vunpack.c.l.b16 %v352
        %v433 = vunpack.c.l.b16 %v353
        %v434 = vunpack.c.l.b16 %v354
        %v435 = vunpack.c.l.b16 %v355
        %v436 = vunpack.c.l.b16 %v356
        %v437 = vunpack.c.l.b16 %v357
        %v438 = vunpack.c.l.b16 %v358
        %v439 = vunpack.c.l.b16 %v359
        %v440 = vunpack.c.l.b16 %v360
        %v441 = vunpack.c.l.b16 %v361
        %v442 = vunpack.c.l.b16 %v362
        %v443 = vunpack.c.l.b16 %v363
        %v444 = vpack.c.b16 %v413, %v412
        %v445 = vpack.c.b16 %v415, %v414
        %v446 = vpack.c.b16 %v417, %v416
        %v447 = vpack.c.b16 %v419, %v418
        %v448 = vpack.c.b16 %v421, %v420
        %v449 = vpack.c.b16 %v423, %v422
        %v450 = vpack.c.b16 %v425, %v424
        %v451 = vpack.c.b16 %v427, %v426
        %v452 = vpack.c.b16 %v429, %v428
        %v453 = vpack.c.b16 %v431, %v430
        %v454 = vpack.c.b16 %v433, %v432
        %v455 = vpack.c.b16 %v435, %v434
        %v456 = vpack.c.b16 %v437, %v436
        %v457 = vpack.c.b16 %v439, %v438
        %v458 = vpack.c.b16 %v441, %v440
        %v459 = vpack.c.b16 %v443, %v442
        %v492 = vunpack.c.l.b16 %v364
        %v493 = vunpack.c.l.b16 %v365
        %v494 = vunpack.c.l.b16 %v366
        %v495 = vunpack.c.l.b16 %v367
        %v496 = vunpack.c.l.b16 %v368
        %v497 = vunpack.c.l.b16 %v369
        %v498 = vunpack.c.l.b16 %v370
        %v499 = vunpack.c.l.b16 %v371
        %v500 = vunpack.c.l.b16 %v372
        %v501 = vunpack.c.l.b16 %v373
        %v502 = vunpack.c.l.b16 %v374
        %v503 = vunpack.c.l.b16 %v375
        %v504 = vunpack.c.l.b16 %v376
        %v505 = vunpack.c.l.b16 %v377
        %v506 = vunpack.c.l.b16 %v378
        %v507 = vunpack.c.l.b16 %v379
        %v508 = vpack.c.b16 %v493, %v492
        %v509 = vpack.c.b16 %v495, %v494
        %v510 = vpack.c.b16 %v497, %v496
        %v511 = vpack.c.b16 %v499, %v498
        %v512 = vpack.c.b16 %v501, %v500
        %v513 = vpack.c.b16 %v503, %v502
        %v514 = vpack.c.b16 %v505, %v504
        %v515 = vpack.c.b16 %v507, %v506
        %524 = vmatprep.subr.bf16.mxu0 0
        %525 = vmatpush1.bf16.msra.mxu0 %v508
        %526 = vmatprep.subr.bf16.mxu0 0
        %527 = vmatpush1.bf16.msra.mxu0 %v509
        %528 = vmatprep.subr.bf16.mxu0 0
        %529 = vmatpush1.bf16.msra.mxu0 %v510
        %530 = vmatprep.subr.bf16.mxu0 0
        %531 = vmatpush1.bf16.msra.mxu0 %v511
        %532 = vmatprep.subr.bf16.mxu0 0
        %533 = vmatpush1.bf16.msra.mxu0 %v512
        %534 = vmatprep.subr.bf16.mxu0 0
        %535 = vmatpush1.bf16.msra.mxu0 %v513
        %536 = vmatprep.subr.bf16.mxu0 0
        %537 = vmatpush1.bf16.msra.mxu0 %v514
        %538 = vmatprep.subr.bf16.mxu0 0
        %539 = vmatpush1.bf16.msra.mxu0 %v515
        %540 = vmatprep.subr.bf16.mxu0 0
        %541 = vmatpush1.bf16.msra.mxu0 0
        %542 = vmatprep.subr.bf16.mxu0 0
        %543 = vmatpush1.bf16.msra.mxu0 0
        %544 = vmatprep.subr.bf16.mxu0 0
        %545 = vmatpush1.bf16.msra.mxu0 0
        %546 = vmatprep.subr.bf16.mxu0 0
        %547 = vmatpush1.bf16.msra.mxu0 0
        %548 = vmatprep.subr.bf16.mxu0 0
        %549 = vmatpush1.bf16.msra.mxu0 0
        %550 = vmatprep.subr.bf16.mxu0 0
        %551 = vmatpush1.bf16.msra.mxu0 0
        %552 = vmatprep.subr.bf16.mxu0 0
        %553 = vmatpush1.bf16.msra.mxu0 0
        %554 = vmatprep.subr.bf16.mxu0 0
        %555 = vmatpush1.bf16.msra.mxu0 0
        %556 = vmatprep.mubr.bf16.mxu0 0
        %557 = vmatmul.mubr.bf16.gmra.mrb[0].mxu0 %v444
        %v558 = vpop.f32.mrb[0].mxu0
        %v559 = vadd.f32 0.0, %v558
        %v560 = vpop.f32.mrb[0].mxu0
        %v561 = vpop.f32.mrb[0].mxu0
        %v562 = vadd.f32 0.0, %v561
        %v563 = vpop.f32.mrb[0].mxu0
        %564 = vmatprep.mubr.bf16.mxu0 0
        %565 = vmatmul.mubr.bf16.gmra.mrb[0].mxu0 %v445
        %v566 = vpop.f32.mrb[0].mxu0
        %v567 = vadd.f32 0.0, %v566
        %v568 = vpop.f32.mrb[0].mxu0
        %v569 = vpop.f32.mrb[0].mxu0
        %v570 = vadd.f32 0.0, %v569
        %v571 = vpop.f32.mrb[0].mxu0
        %572 = vmatprep.mubr.bf16.mxu0 0
        %573 = vmatmul.mubr.bf16.gmra.mrb[0].mxu0 %v446
        %v574 = vpop.f32.mrb[0].mxu0
        %v575 = vadd.f32 0.0, %v574
        %v576 = vpop.f32.mrb[0].mxu0
        %v577 = vpop.f32.mrb[0].mxu0
        %v578 = vadd.f32 0.0, %v577
        %v579 = vpop.f32.mrb[0].mxu0
        %580 = vmatprep.mubr.bf16.mxu0 0
        %581 = vmatmul.mubr.bf16.gmra.mrb[0].mxu0 %v447
        %v582 = vpop.f32.mrb[0].mxu0
        %v583 = vadd.f32 0.0, %v582
        %v584 = vpop.f32.mrb[0].mxu0
        %v585 = vpop.f32.mrb[0].mxu0
        %v586 = vadd.f32 0.0, %v585
        %v587 = vpop.f32.mrb[0].mxu0
        %588 = vmatprep.mubr.bf16.mxu0 0
        %589 = vmatmul.mubr.bf16.gmra.mrb[0].mxu0 %v448
        %v590 = vpop.f32.mrb[0].mxu0
        %v591 = vadd.f32 0.0, %v590
        %v592 = vpop.f32.mrb[0].mxu0
        %v593 = vpop.f32.mrb[0].mxu0
        %v594 = vadd.f32 0.0, %v593
        %v595 = vpop.f32.mrb[0].mxu0
        %596 = vmatprep.mubr.bf16.mxu0 0
        %597 = vmatmul.mubr.bf16.gmra.mrb[0].mxu0 %v449
        %v598 = vpop.f32.mrb[0].mxu0
        %v599 = vadd.f32 0.0, %v598
        %v600 = vpop.f32.mrb[0].mxu0
        %v601 = vpop.f32.mrb[0].mxu0
        %v602 = vadd.f32 0.0, %v601
        %v603 = vpop.f32.mrb[0].mxu0
        %604 = vmatprep.mubr.bf16.mxu0 0
        %605 = vmatmul.mubr.bf16.gmra.mrb[0].mxu0 %v450
        %v606 = vpop.f32.mrb[0].mxu0
        %v607 = vadd.f32 0.0, %v606
        %v608 = vpop.f32.mrb[0].mxu0
        %v609 = vpop.f32.mrb[0].mxu0
        %v610 = vadd.f32 0.0, %v609
        %v611 = vpop.f32.mrb[0].mxu0
        %612 = vmatprep.mubr.bf16.mxu0 0
        %613 = vmatmul.mubr.bf16.gmra.mrb[0].mxu0 %v451
        %v614 = vpop.f32.mrb[0].mxu0
        %v615 = vadd.f32 0.0, %v614
        %v616 = vpop.f32.mrb[0].mxu0
        %v617 = vpop.f32.mrb[0].mxu0
        %v618 = vadd.f32 0.0, %v617
        %v619 = vpop.f32.mrb[0].mxu0
        %620 = vmatprep.mubr.bf16.mxu0 0
        %621 = vmatmul.mubr.bf16.gmra.mrb[0].mxu0 %v452
        %v622 = vpop.f32.mrb[0].mxu0
        %v623 = vadd.f32 0.0, %v622
        %v624 = vpop.f32.mrb[0].mxu0
        %v625 = vpop.f32.mrb[0].mxu0
        %v626 = vadd.f32 0.0, %v625
        %v627 = vpop.f32.mrb[0].mxu0
        %628 = vmatprep.mubr.bf16.mxu0 0
        %629 = vmatmul.mubr.bf16.gmra.mrb[0].mxu0 %v453
        %v630 = vpop.f32.mrb[0].mxu0
        %v631 = vadd.f32 0.0, %v630
        %v632 = vpop.f32.mrb[0].mxu0
        %v633 = vpop.f32.mrb[0].mxu0
        %v634 = vadd.f32 0.0, %v633
        %v635 = vpop.f32.mrb[0].mxu0
        %636 = vmatprep.mubr.bf16.mxu0 0
        %637 = vmatmul.mubr.bf16.gmra.mrb[0].mxu0 %v454
        %v638 = vpop.f32.mrb[0].mxu0
        %v639 = vadd.f32 0.0, %v638
        %v640 = vpop.f32.mrb[0].mxu0
        %v641 = vpop.f32.mrb[0].mxu0
        %v642 = vadd.f32 0.0, %v641
        %v643 = vpop.f32.mrb[0].mxu0
        %644 = vmatprep.mubr.bf16.mxu0 0
        %645 = vmatmul.mubr.bf16.gmra.mrb[0].mxu0 %v455
        %v646 = vpop.f32.mrb[0].mxu0
        %v647 = vadd.f32 0.0, %v646
        %v648 = vpop.f32.mrb[0].mxu0
        %v649 = vpop.f32.mrb[0].mxu0
        %v650 = vadd.f32 0.0, %v649
        %v651 = vpop.f32.mrb[0].mxu0
        %652 = vmatprep.mubr.bf16.mxu0 0
        %653 = vmatmul.mubr.bf16.gmra.mrb[0].mxu0 %v456
        %v654 = vpop.f32.mrb[0].mxu0
        %v655 = vadd.f32 0.0, %v654
        %v656 = vpop.f32.mrb[0].mxu0
        %v657 = vpop.f32.mrb[0].mxu0
        %v658 = vadd.f32 0.0, %v657
        %v659 = vpop.f32.mrb[0].mxu0
        %660 = vmatprep.mubr.bf16.mxu0 0
        %661 = vmatmul.mubr.bf16.gmra.mrb[0].mxu0 %v457
        %v662 = vpop.f32.mrb[0].mxu0
        %v663 = vadd.f32 0.0, %v662
        %v664 = vpop.f32.mrb[0].mxu0
        %v665 = vpop.f32.mrb[0].mxu0
        %v666 = vadd.f32 0.0, %v665
        %v667 = vpop.f32.mrb[0].mxu0
        %668 = vmatprep.mubr.bf16.mxu0 0
        %669 = vmatmul.mubr.bf16.gmra.mrb[0].mxu0 %v458
        %v670 = vpop.f32.mrb[0].mxu0
        %v671 = vadd.f32 0.0, %v670
        %v672 = vpop.f32.mrb[0].mxu0
        %v673 = vpop.f32.mrb[0].mxu0
        %v674 = vadd.f32 0.0, %v673
        %v675 = vpop.f32.mrb[0].mxu0
        %676 = vmatprep.mubr.bf16.mxu0 0
        %677 = vmatmul.mubr.bf16.gmra.mrb[0].mxu0 %v459
        %v678 = vpop.f32.mrb[0].mxu0
        %v679 = vadd.f32 0.0, %v678
        %v680 = vpop.f32.mrb[0].mxu0
        %v681 = vpop.f32.mrb[0].mxu0
        %v682 = vadd.f32 0.0, %v681
        %v683 = vpop.f32.mrb[0].mxu0
        %684 = vdwg.mxu0
        %v685 = vadd.f32 %v300, %v559
        %v686 = vadd.f32 %v301, %v562
        %v687 = vadd.f32 %v302, %v567
        %v688 = vadd.f32 %v303, %v570
        %v689 = vadd.f32 %v304, %v575
        %v690 = vadd.f32 %v305, %v578
        %v691 = vadd.f32 %v306, %v583
        %v692 = vadd.f32 %v307, %v586
        %v693 = vadd.f32 %v308, %v591
        %v694 = vadd.f32 %v309, %v594
        %v695 = vadd.f32 %v310, %v599
        %v696 = vadd.f32 %v311, %v602
        %v697 = vadd.f32 %v312, %v607
        %v698 = vadd.f32 %v313, %v610
        %v699 = vadd.f32 %v314, %v615
        %v700 = vadd.f32 %v315, %v618
        %v701 = vadd.f32 %v316, %v623
        %v702 = vadd.f32 %v317, %v626
        %v703 = vadd.f32 %v318, %v631
        %v704 = vadd.f32 %v319, %v634
        %v705 = vadd.f32 %v320, %v639
        %v706 = vadd.f32 %v321, %v642
        %v707 = vadd.f32 %v322, %v647
        %v708 = vadd.f32 %v323, %v650
        %v709 = vadd.f32 %v324, %v655
        %v710 = vadd.f32 %v325, %v658
        %v711 = vadd.f32 %v326, %v663
        %v712 = vadd.f32 %v327, %v666
        %v713 = vadd.f32 %v328, %v671
        %v714 = vadd.f32 %v329, %v674
        %v715 = vadd.f32 %v330, %v679
        %v716 = vadd.f32 %v331, %v682
        %717 = vst [vmem:[#allocation2] sm:$0xff] %v685
        %718 = vst [vmem:[#allocation2 + $0x8] sm:$0xff] %v686
        %719 = vst [vmem:[#allocation2 + $0x10] sm:$0xff] %v687
        %720 = vst [vmem:[#allocation2 + $0x18] sm:$0xff] %v688
        %721 = vst [vmem:[#allocation2 + $0x20] sm:$0xff] %v689
        %722 = vst [vmem:[#allocation2 + $0x28] sm:$0xff] %v690
        %723 = vst [vmem:[#allocation2 + $0x30] sm:$0xff] %v691
        %724 = vst [vmem:[#allocation2 + $0x38] sm:$0xff] %v692
        %725 = vst [vmem:[#allocation2 + $0x40] sm:$0xff] %v693
        %726 = vst [vmem:[#allocation2 + $0x48] sm:$0xff] %v694
        %727 = vst [vmem:[#allocation2 + $0x50] sm:$0xff] %v695
        %728 = vst [vmem:[#allocation2 + $0x58] sm:$0xff] %v696
        %729 = vst [vmem:[#allocation2 + $0x60] sm:$0xff] %v697
        %730 = vst [vmem:[#allocation2 + $0x68] sm:$0xff] %v698
        %731 = vst [vmem:[#allocation2 + $0x70] sm:$0xff] %v699
        %732 = vst [vmem:[#allocation2 + $0x78] sm:$0xff] %v700
        %733 = vst [vmem:[#allocation2 + $0x80] sm:$0xff] %v701
        %734 = vst [vmem:[#allocation2 + $0x88] sm:$0xff] %v702
        %735 = vst [vmem:[#allocation2 + $0x90] sm:$0xff] %v703
        %736 = vst [vmem:[#allocation2 + $0x98] sm:$0xff] %v704
        %737 = vst [vmem:[#allocation2 + $0xa0] sm:$0xff] %v705
        %738 = vst [vmem:[#allocation2 + $0xa8] sm:$0xff] %v706
        %739 = vst [vmem:[#allocation2 + $0xb0] sm:$0xff] %v707
        %740 = vst [vmem:[#allocation2 + $0xb8] sm:$0xff] %v708
        %741 = vst [vmem:[#allocation2 + $0xc0] sm:$0xff] %v709
        %742 = vst [vmem:[#allocation2 + $0xc8] sm:$0xff] %v710
        %743 = vst [vmem:[#allocation2 + $0xd0] sm:$0xff] %v711
        %744 = vst [vmem:[#allocation2 + $0xd8] sm:$0xff] %v712
        %745 = vst [vmem:[#allocation2 + $0xe0] sm:$0xff] %v713
        %746 = vst [vmem:[#allocation2 + $0xe8] sm:$0xff] %v714
        %747 = vst [vmem:[#allocation2 + $0xf0] sm:$0xff] %v715
        %748 = vst [vmem:[#allocation2 + $0xf8] sm:$0xff] %v716
        // Predicated region
        $region45: #{tpu_custom_call.1} parent=31 // pred_check
          %p749 = pneg %p257
        $region46: #{tpu_custom_call.1} parent=31 // pred_check_branch
          %751 = sbr.rel (%p749) target = $region48
        $region47: #{tpu_custom_call.1} parent=31 // pred_region
          %v752 = vld [vmem:[#allocation2] sm:$0xff]
          %v753 = vld [vmem:[#allocation2 + $0x8] sm:$0xff]
          %v754 = vld [vmem:[#allocation2 + $0x10] sm:$0xff]
          %v755 = vld [vmem:[#allocation2 + $0x18] sm:$0xff]
          %v756 = vld [vmem:[#allocation2 + $0x20] sm:$0xff]
          %v757 = vld [vmem:[#allocation2 + $0x28] sm:$0xff]
          %v758 = vld [vmem:[#allocation2 + $0x30] sm:$0xff]
          %v759 = vld [vmem:[#allocation2 + $0x38] sm:$0xff]
          %v760 = vld [vmem:[#allocation2 + $0x40] sm:$0xff]
          %v761 = vld [vmem:[#allocation2 + $0x48] sm:$0xff]
          %v762 = vld [vmem:[#allocation2 + $0x50] sm:$0xff]
          %v763 = vld [vmem:[#allocation2 + $0x58] sm:$0xff]
          %v764 = vld [vmem:[#allocation2 + $0x60] sm:$0xff]
          %v765 = vld [vmem:[#allocation2 + $0x68] sm:$0xff]
          %v766 = vld [vmem:[#allocation2 + $0x70] sm:$0xff]
          %v767 = vld [vmem:[#allocation2 + $0x78] sm:$0xff]
          %v768 = vld [vmem:[#allocation2 + $0x80] sm:$0xff]
          %v769 = vld [vmem:[#allocation2 + $0x88] sm:$0xff]
          %v770 = vld [vmem:[#allocation2 + $0x90] sm:$0xff]
          %v771 = vld [vmem:[#allocation2 + $0x98] sm:$0xff]
          %v772 = vld [vmem:[#allocation2 + $0xa0] sm:$0xff]
          %v773 = vld [vmem:[#allocation2 + $0xa8] sm:$0xff]
          %v774 = vld [vmem:[#allocation2 + $0xb0] sm:$0xff]
          %v775 = vld [vmem:[#allocation2 + $0xb8] sm:$0xff]
          %v776 = vld [vmem:[#allocation2 + $0xc0] sm:$0xff]
          %v777 = vld [vmem:[#allocation2 + $0xc8] sm:$0xff]
          %v778 = vld [vmem:[#allocation2 + $0xd0] sm:$0xff]
          %v779 = vld [vmem:[#allocation2 + $0xd8] sm:$0xff]
          %v780 = vld [vmem:[#allocation2 + $0xe0] sm:$0xff]
          %v781 = vld [vmem:[#allocation2 + $0xe8] sm:$0xff]
          %v782 = vld [vmem:[#allocation2 + $0xf0] sm:$0xff]
          %v783 = vld [vmem:[#allocation2 + $0xf8] sm:$0xff]
          %v784 = vmax.f32 %v752, 0.0
          %v785 = vmax.f32 %v753, 0.0
          %v786 = vmax.f32 %v754, 0.0
          %v787 = vmax.f32 %v755, 0.0
          %v788 = vmax.f32 %v756, 0.0
          %v789 = vmax.f32 %v757, 0.0
          %v790 = vmax.f32 %v758, 0.0
          %v791 = vmax.f32 %v759, 0.0
          %v792 = vmax.f32 %v760, 0.0
          %v793 = vmax.f32 %v761, 0.0
          %v794 = vmax.f32 %v762, 0.0
          %v795 = vmax.f32 %v763, 0.0
          %v796 = vmax.f32 %v764, 0.0
          %v797 = vmax.f32 %v765, 0.0
          %v798 = vmax.f32 %v766, 0.0
          %v799 = vmax.f32 %v767, 0.0
          %v800 = vmax.f32 %v768, 0.0
          %v801 = vmax.f32 %v769, 0.0
          %v802 = vmax.f32 %v770, 0.0
          %v803 = vmax.f32 %v771, 0.0
          %v804 = vmax.f32 %v772, 0.0
          %v805 = vmax.f32 %v773, 0.0
          %v806 = vmax.f32 %v774, 0.0
          %v807 = vmax.f32 %v775, 0.0
          %v808 = vmax.f32 %v776, 0.0
          %v809 = vmax.f32 %v777, 0.0
          %v810 = vmax.f32 %v778, 0.0
          %v811 = vmax.f32 %v779, 0.0
          %v812 = vmax.f32 %v780, 0.0
          %v813 = vmax.f32 %v781, 0.0
          %v814 = vmax.f32 %v782, 0.0
          %v815 = vmax.f32 %v783, 0.0
          %v816 = vpack.c.bf16 %v785, %v784
          %v817 = vpack.c.bf16 %v787, %v786
          %v818 = vpack.c.bf16 %v789, %v788
          %v819 = vpack.c.bf16 %v791, %v790
          %v820 = vpack.c.bf16 %v793, %v792
          %v821 = vpack.c.bf16 %v795, %v794
          %v822 = vpack.c.bf16 %v797, %v796
          %v823 = vpack.c.bf16 %v799, %v798
          %v824 = vpack.c.bf16 %v801, %v800
          %v825 = vpack.c.bf16 %v803, %v802
          %v826 = vpack.c.bf16 %v805, %v804
          %v827 = vpack.c.bf16 %v807, %v806
          %v828 = vpack.c.bf16 %v809, %v808
          %v829 = vpack.c.bf16 %v811, %v810
          %v830 = vpack.c.bf16 %v813, %v812
          %v831 = vpack.c.bf16 %v815, %v814
          %v848 = vunpack.c.l.b16 %v816
          %v849 = vunpack.c.h.b16 %v816
          %v850 = vunpack.c.l.b16 %v817
          %v851 = vunpack.c.h.b16 %v817
          %v852 = vunpack.c.l.b16 %v818
          %v853 = vunpack.c.h.b16 %v818
          %v854 = vunpack.c.l.b16 %v819
          %v855 = vunpack.c.h.b16 %v819
          %v856 = vunpack.c.l.b16 %v820
          %v857 = vunpack.c.h.b16 %v820
          %v858 = vunpack.c.l.b16 %v821
          %v859 = vunpack.c.h.b16 %v821
          %v860 = vunpack.c.l.b16 %v822
          %v861 = vunpack.c.h.b16 %v822
          %v862 = vunpack.c.l.b16 %v823
          %v863 = vunpack.c.h.b16 %v823
          %v864 = vunpack.c.l.b16 %v824
          %v865 = vunpack.c.h.b16 %v824
          %v866 = vunpack.c.l.b16 %v825
          %v867 = vunpack.c.h.b16 %v825
          %v868 = vunpack.c.l.b16 %v826
          %v869 = vunpack.c.h.b16 %v826
          %v870 = vunpack.c.l.b16 %v827
          %v871 = vunpack.c.h.b16 %v827
          %v872 = vunpack.c.l.b16 %v828
          %v873 = vunpack.c.h.b16 %v828
          %v874 = vunpack.c.l.b16 %v829
          %v875 = vunpack.c.h.b16 %v829
          %v876 = vunpack.c.l.b16 %v830
          %v877 = vunpack.c.h.b16 %v830
          %v878 = vunpack.c.l.b16 %v831
          %v879 = vunpack.c.h.b16 %v831
          %v880 = vpack.c.b16 %v848, %v848
          %v881 = vpack.c.b16 %v849, %v849
          %v882 = vpack.c.b16 %v850, %v850
          %v883 = vpack.c.b16 %v851, %v851
          %v884 = vpack.c.b16 %v852, %v852
          %v885 = vpack.c.b16 %v853, %v853
          %v886 = vpack.c.b16 %v854, %v854
          %v887 = vpack.c.b16 %v855, %v855
          %v888 = vpack.c.b16 %v856, %v856
          %v889 = vpack.c.b16 %v857, %v857
          %v890 = vpack.c.b16 %v858, %v858
          %v891 = vpack.c.b16 %v859, %v859
          %v892 = vpack.c.b16 %v860, %v860
          %v893 = vpack.c.b16 %v861, %v861
          %v894 = vpack.c.b16 %v862, %v862
          %v895 = vpack.c.b16 %v863, %v863
          %v896 = vpack.c.b16 %v864, %v864
          %v897 = vpack.c.b16 %v865, %v865
          %v898 = vpack.c.b16 %v866, %v866
          %v899 = vpack.c.b16 %v867, %v867
          %v900 = vpack.c.b16 %v868, %v868
          %v901 = vpack.c.b16 %v869, %v869
          %v902 = vpack.c.b16 %v870, %v870
          %v903 = vpack.c.b16 %v871, %v871
          %v904 = vpack.c.b16 %v872, %v872
          %v905 = vpack.c.b16 %v873, %v873
          %v906 = vpack.c.b16 %v874, %v874
          %v907 = vpack.c.b16 %v875, %v875
          %v908 = vpack.c.b16 %v876, %v876
          %v909 = vpack.c.b16 %v877, %v877
          %v910 = vpack.c.b16 %v878, %v878
          %v911 = vpack.c.b16 %v879, %v879
          %944 = vst [vmem:[%s249] sm:$0xf] %v880
          %945 = vst [vmem:[%s249 + $0x4] sm:$0xf] %v881
          %946 = vst [vmem:[%s249 + $0x8] sm:$0xf] %v882
          %947 = vst [vmem:[%s249 + $0xc] sm:$0xf] %v883
          %948 = vst [vmem:[%s249 + $0x10] sm:$0xf] %v884
          %949 = vst [vmem:[%s249 + $0x14] sm:$0xf] %v885
          %950 = vst [vmem:[%s249 + $0x18] sm:$0xf] %v886
          %951 = vst [vmem:[%s249 + $0x1c] sm:$0xf] %v887
          %952 = vst [vmem:[%s249 + $0x20] sm:$0xf] %v888
          %953 = vst [vmem:[%s249 + $0x24] sm:$0xf] %v889
          %954 = vst [vmem:[%s249 + $0x28] sm:$0xf] %v890
          %955 = vst [vmem:[%s249 + $0x2c] sm:$0xf] %v891
          %956 = vst [vmem:[%s249 + $0x30] sm:$0xf] %v892
          %957 = vst [vmem:[%s249 + $0x34] sm:$0xf] %v893
          %958 = vst [vmem:[%s249 + $0x38] sm:$0xf] %v894
          %959 = vst [vmem:[%s249 + $0x3c] sm:$0xf] %v895
          %960 = vst [vmem:[%s249 + $0x40] sm:$0xf] %v896
          %961 = vst [vmem:[%s249 + $0x44] sm:$0xf] %v897
          %962 = vst [vmem:[%s249 + $0x48] sm:$0xf] %v898
          %963 = vst [vmem:[%s249 + $0x4c] sm:$0xf] %v899
          %964 = vst [vmem:[%s249 + $0x50] sm:$0xf] %v900
          %965 = vst [vmem:[%s249 + $0x54] sm:$0xf] %v901
          %966 = vst [vmem:[%s249 + $0x58] sm:$0xf] %v902
          %967 = vst [vmem:[%s249 + $0x5c] sm:$0xf] %v903
          %968 = vst [vmem:[%s249 + $0x60] sm:$0xf] %v904
          %969 = vst [vmem:[%s249 + $0x64] sm:$0xf] %v905
          %970 = vst [vmem:[%s249 + $0x68] sm:$0xf] %v906
          %971 = vst [vmem:[%s249 + $0x6c] sm:$0xf] %v907
          %972 = vst [vmem:[%s249 + $0x70] sm:$0xf] %v908
          %973 = vst [vmem:[%s249 + $0x74] sm:$0xf] %v909
          %974 = vst [vmem:[%s249 + $0x78] sm:$0xf] %v910
          %975 = vst [vmem:[%s249 + $0x7c] sm:$0xf] %v911
        $region48: #{tpu_custom_call.1} parent=31 // pred_fallthru
          _
        %s976 = sand.u32 %s132, 1
        %s977 = scalar_lea.sflag [#allocation5], %s976
        %s978 = sand.u32 %s132, 1
        %s979 = smul.addr %s978, 128
        %s980 = scalar_lea.vmem [#allocation8], %s979
        // Predicated region
        $region49: #{tpu_custom_call.1} parent=31 // pred_check
          %p981 = pneg %p142
        $region50: #{tpu_custom_call.1} parent=31 // pred_check_branch
          %983 = sbr.rel (%p981) target = $region52
        $region51: #{tpu_custom_call.1} parent=31 // pred_region
          %s984 = smul.u32 32, %s26
          %s986 = ssub.s32 2048, 2048
          %987 = vsyncadd %s977, %s986
          %s988 = sadd.s32 %s27, %s984
          %s989 = smul.addr %s988, 64
          %s990 = scalar_lea.hbm %s3, %s989
          %s991 = sshll.u32 %s980, 4
          %s992 = int_to_ptr.vmem [resolvable:$true] %s991
          %997 = dma.vmem_to_hbm [thread:$0]  %s992, 2048, %s990, %s977, 64, 64, 4
        $region52: #{tpu_custom_call.1} parent=31 // pred_fallthru
          _
      $region32: #{tpu_custom_call.1} parent=5 // pred_fallthru
        _
      %p998 = scmp.le.s32.totalorder 2, %s16
      // Predicated region
      $region53: #{tpu_custom_call.1} parent=5 // pred_check
        %p999 = pneg %p998
      $region54: #{tpu_custom_call.1} parent=5 // pred_check_branch
        %1001 = sbr.rel (%p999) target = $region56
      $region55: #{tpu_custom_call.1} parent=5 // pred_region
        %s1002 = ssub.s32 %s16, 2
        // Predicated region
        $region57: #{tpu_custom_call.1} parent=55 // pred_check
          %p1003 = pneg %p148
        $region58: #{tpu_custom_call.1} parent=55 // pred_check_branch
          %1005 = sbr.rel (%p1003) target = $region60
        $region59: #{tpu_custom_call.1} parent=55 // pred_region
          %s1006 = sand.u32 %s133, 1
          %s1007 = scalar_lea.sflag [#allocation5], %s1006
          %s1008 = sand.u32 %s133, 1
          %s1009 = smul.addr %s1008, 128
          %s1010 = scalar_lea.vmem [#allocation8], %s1009
          %1011 = dma.done %s1007, 2048
        $region60: #{tpu_custom_call.1} parent=55 // pred_fallthru
          _
      $region56: #{tpu_custom_call.1} parent=5 // pred_fallthru
        _
    $region6: #{tpu_custom_call.1} parent=1 // loop_footer
      %s20 = sadd.s32 1, %s16
    $region7: #{tpu_custom_call.1} parent=1 // loop_footer_branch
      %15 = sbr.rel target = $region3
    $region8: #{tpu_custom_call.1} parent=1 // loop_exit
      _
    %1012 = vsyncpa [#allocation4], 1
    %s1013 = scalar_lea.sflag [#allocation4], 1
    %1014 = vsyncpa %s1013, 1
    %1015 = vsyncpa [#allocation7], 1
    %1016 = vsyncpa [#allocation5], 1
    %s1017 = scalar_lea.sflag [#allocation5], 1
    %1018 = vsyncpa %s1017, 1

</llo_original>
